<compile_context>
chip_gen: v6e
topology: v6e:2x2x1
jax: 0.10.0
libtpu: 0.0.40
codegen_flags: <defaults>
</compile_context>

<pallas_src>
import jax
import jax.numpy as jnp
from jax.experimental import pallas as pl
from jax.experimental.pallas import tpu as pltpu

HIDDEN = 16            # logical hidden width of fc1 (nn.Linear(input_size, 16))
HID_PAD = 128          # hidden width padded to one full vreg lane dim
SMALL_BATCH_CUTOFF = 128
MAX_TB = 2048


def _round_up(x, m):
    return (x + m - 1) // m * m


def neural_controller_kernel(x_ref, w1_ref, b1_ref, w2_ref, b2_ref, o_ref):
    # fc1 + ReLU: bf16 MXU operands, f32 accumulate + f32 epilogue.
    # Hidden lanes 16..127 of w1/b1 are exact zeros -> h padding is exact zero.
    x = x_ref[...].astype(w1_ref.dtype)
    h = jnp.dot(x, w1_ref[...], preferred_element_type=jnp.float32)
    h = jnp.maximum(h + b1_ref[...], 0.0)
    # fc2 + tanh * 100 (w2 rows >= 16 are zero, so the pad contributes nothing).
    y = jnp.dot(h.astype(w2_ref.dtype), w2_ref[...],
                preferred_element_type=jnp.float32)
    o_ref[...] = jnp.tanh(y + b2_ref[...]) * 100.0


def prepare_params(w1, b1, w2, b2, matmul_dtype=jnp.bfloat16):
    """One-time parameter prep (NOT on the per-call forward path).

    PyTorch layouts in:  w1 (16, in), b1 (16,), w2 (out, 16), b2 (out,).
    Produces (in, out)-layout tiles: weights in `matmul_dtype` (bf16 by
    default for the MXU), biases in f32.  Hidden dim padded 16 -> 128 with
    exact zeros; output dim is NOT padded.
    """
    out_size = int(w2.shape[0])
    in_size = int(w1.shape[1])

    w1_t = (jnp.zeros((in_size, HID_PAD), matmul_dtype)
            .at[:, :HIDDEN].set(jnp.transpose(w1).astype(matmul_dtype)))
    b1_p = (jnp.zeros((1, HID_PAD), jnp.float32)
            .at[0, :HIDDEN].set(b1.astype(jnp.float32)))
    w2_t = (jnp.zeros((HID_PAD, out_size), matmul_dtype)
            .at[:HIDDEN, :].set(jnp.transpose(w2).astype(matmul_dtype)))
    b2_p = b2.astype(jnp.float32).reshape(1, out_size)

    return {"w1": w1_t, "b1": b1_p, "w2": w2_t, "b2": b2_p,
            "in_size": in_size, "out_size": out_size}


@jax.jit
def _pallas_forward(x, w1, b1, w2, b2):
    B, in_size = x.shape
    out_size = w2.shape[1]

    # Batch tile: whole batch for small/medium B (block == full array dim is
    # always legal); for large B split into >= 2 multiple-of-8 tiles so the
    # "parallel" axis can shard across v7x's two TensorCores, capped at 2048
    # rows (amortizes ~0.35 us/step, trivially within scoped VMEM).
    if B >= 1024:
        TB = min(_round_up(-(-B // 2), 8), MAX_TB)
    else:
        TB = B
    grid = (pl.cdiv(B, TB),)

    flops = 2 * B * (in_size * HID_PAD + HID_PAD * out_size)
    bytes_accessed = (x.size * x.dtype.itemsize
                      + w1.size * w1.dtype.itemsize
                      + b1.size * 4
                      + w2.size * w2.dtype.itemsize
                      + b2.size * 4
                      + B * out_size * 4)

    return pl.pallas_call(
        neural_controller_kernel,
        out_shape=jax.ShapeDtypeStruct((B, out_size), jnp.float32),
        grid=grid,
        in_specs=[
            pl.BlockSpec((TB, in_size), lambda i: (i, 0)),        # x tile
            pl.BlockSpec((in_size, HID_PAD), lambda i: (0, 0)),   # w1 (resident)
            pl.BlockSpec((1, HID_PAD), lambda i: (0, 0)),         # b1
            pl.BlockSpec((HID_PAD, out_size), lambda i: (0, 0)),  # w2
            pl.BlockSpec((1, out_size), lambda i: (0, 0)),        # b2
        ],
        out_specs=pl.BlockSpec((TB, out_size), lambda i: (i, 0)),  # true width
        compiler_params=pltpu.CompilerParams(
            dimension_semantics=("parallel",)),
        cost_estimate=pl.CostEstimate(
            flops=flops,
            transcendentals=B * out_size,
            bytes_accessed=bytes_accessed),
    )(x, w1, b1, w2, b2)


@jax.jit
def _xla_forward(x, w1, b1, w2, b2):
    # Small-batch path: a fused XLA dot+elementwise beats custom-call dispatch.
    h = jnp.maximum(
        jnp.dot(x.astype(w1.dtype), w1, preferred_element_type=jnp.float32)
        + b1, 0.0)
    y = jnp.dot(h.astype(w2.dtype), w2,
                preferred_element_type=jnp.float32) + b2
    return jnp.tanh(y) * 100.0


def neural_controller_forward(x, params, force_pallas=False):
    """x: (B, input_size). params: output of prepare_params()."""
    w1, b1, w2, b2 = params["w1"], params["b1"], params["w2"], params["b2"]
    if x.shape[0] <= SMALL_BATCH_CUTOFF and not force_pallas:
        return _xla_forward(x, w1, b1, w2, b2)
    return _pallas_forward(x, w1, b1, w2, b2)


def reference_forward_f32(x, w1, b1, w2, b2):
    # Full-f32 PyTorch semantics.
    h = jnp.maximum(x @ w1.T + b1, 0.0)
    y = h @ w2.T + b2
    return jnp.tanh(y) * 100.0


def reference_forward_mm_dtype(x, w1, b1, w2, b2, dtype=jnp.bfloat16):
    # Same precision choices as the kernel (bf16 operands, f32 accumulate).
    h = jnp.dot(x.astype(dtype), w1.T.astype(dtype),
                preferred_element_type=jnp.float32) + b1
    h = jnp.maximum(h, 0.0)
    y = jnp.dot(h.astype(dtype), w2.T.astype(dtype),
                preferred_element_type=jnp.float32) + b2
    return jnp.tanh(y) * 100.0


# TODO(synk): load_flat_weights is a host-side parameter-loading helper, not
# part of the forward pass; reproduce it in numpy/JAX outside the kernel.

if __name__ == "__main__":
    input_size = 32
    output_size = 8
    batch = 8

    key = jax.random.PRNGKey(0)
    kx, k1, k2, k3, k4 = jax.random.split(key, 5)

    x = jax.random.normal(kx, (batch, input_size), dtype=jnp.float32)
    # PyTorch nn.Linear layouts: fc1 (16, in), fc2 (out, 16).
    w1 = jax.random.normal(k1, (16, input_size), dtype=jnp.float32) * 0.1
    b1 = jax.random.normal(k2, (16,), dtype=jnp.float32) * 0.1
    w2 = jax.random.normal(k3, (output_size, 16), dtype=jnp.float32) * 0.1
    b2 = jax.random.normal(k4, (output_size,), dtype=jnp.float32) * 0.1

    params = prepare_params(w1, b1, w2, b2)   # one-time prep, off the hot path

    # Force the Pallas path (the small-batch dispatcher would pick XLA at B=8).
    out = jax.block_until_ready(
        neural_controller_forward(x, params, force_pallas=True))
    assert out.shape == (batch, output_size)

    # Tight check against a reference using the same bf16 matmul operands.
    ref_mm = reference_forward_mm_dtype(x, w1, b1, w2, b2)
    assert jnp.allclose(out, ref_mm, atol=2e-2, rtol=2e-2), \
        "mismatch vs same-precision reference"

    # Loose check against the full-f32 PyTorch semantics (bf16 operand error).
    ref32 = reference_forward_f32(x, w1, b1, w2, b2)
    assert jnp.allclose(out, ref32, atol=1.5, rtol=5e-2), \
        "mismatch vs f32 reference"

    # Small-batch dispatcher (plain XLA path) must agree with the kernel.
    out_small = jax.block_until_ready(neural_controller_forward(x, params))
    assert jnp.allclose(out_small, out, atol=2e-2, rtol=2e-2), \
        "dispatcher path mismatch"

    print("KERNEL_OK")
</pallas_src>

<mosaic_0001>
module attributes {stable_mosaic.version = 11 : i64} {
  func.func @neural_controller_kernel(%arg0: i32, %arg1: memref<8x32xf32, #tpu.memory_space<vmem>>, %arg2: memref<32x128xbf16, #tpu.memory_space<vmem>>, %arg3: memref<1x128xf32, #tpu.memory_space<vmem>>, %arg4: memref<128x8xbf16, #tpu.memory_space<vmem>>, %arg5: memref<1x8xf32, #tpu.memory_space<vmem>>, %arg6: memref<8x8xf32, #tpu.memory_space<vmem>>) attributes {dimension_semantics = [#tpu.dimension_semantics<parallel>], iteration_bounds = array<i64: 1>, scalar_prefetch = 0 : i64, scratch_operands = 0 : i64, tpu.core_type = #tpu.core_type<tc>, window_params = [{transform_indices = @transform_0, window_bounds = array<i64: 8, 32>}, {pipeline_mode = #tpu.pipeline_mode<synchronous>, transform_indices = @transform_1, window_bounds = array<i64: 32, 128>}, {pipeline_mode = #tpu.pipeline_mode<synchronous>, transform_indices = @transform_2, window_bounds = array<i64: 1, 128>}, {pipeline_mode = #tpu.pipeline_mode<synchronous>, transform_indices = @transform_3, window_bounds = array<i64: 128, 8>}, {pipeline_mode = #tpu.pipeline_mode<synchronous>, transform_indices = @transform_4, window_bounds = array<i64: 1, 8>}, {transform_indices = @transform_5, window_bounds = array<i64: 8, 8>}]} {
    %c0 = arith.constant 0 : index
    %c0_0 = arith.constant 0 : index
    %0 = vector.load %arg1[%c0, %c0_0] : memref<8x32xf32, #tpu.memory_space<vmem>>, vector<8x32xf32>
    %1 = arith.truncf %0 : vector<8x32xf32> to vector<8x32xbf16>
    %c0_1 = arith.constant 0 : index
    %c0_2 = arith.constant 0 : index
    %2 = vector.load %arg2[%c0_1, %c0_2] : memref<32x128xbf16, #tpu.memory_space<vmem>>, vector<32x128xbf16>
    %cst = arith.constant dense<0.000000e+00> : vector<8x128xf32>
    %3 = tpu.matmul %1, %2, %cst {dimension_numbers = #tpu.dot_dimension_numbers<[1], [0], [0], [1], [0, 0, 1, 1], [], []>} : vector<8x32xbf16>, vector<32x128xbf16>, vector<8x128xf32> -> vector<8x128xf32>
    %c0_3 = arith.constant 0 : index
    %c0_4 = arith.constant 0 : index
    %4 = vector.load %arg3[%c0_3, %c0_4] : memref<1x128xf32, #tpu.memory_space<vmem>>, vector<1x128xf32>
    %5 = vector.broadcast %4 : vector<1x128xf32> to vector<8x128xf32>
    %6 = arith.addf %3, %5 : vector<8x128xf32>
    %cst_5 = arith.constant 0.000000e+00 : f32
    %7 = vector.broadcast %cst_5 : f32 to vector<8x128xf32>
    %8 = arith.maximumf %6, %7 : vector<8x128xf32>
    %9 = arith.truncf %8 : vector<8x128xf32> to vector<8x128xbf16>
    %c0_6 = arith.constant 0 : index
    %c0_7 = arith.constant 0 : index
    %10 = vector.load %arg4[%c0_6, %c0_7] : memref<128x8xbf16, #tpu.memory_space<vmem>>, vector<128x8xbf16>
    %cst_8 = arith.constant dense<0.000000e+00> : vector<8x8xf32>
    %11 = tpu.matmul %9, %10, %cst_8 {dimension_numbers = #tpu.dot_dimension_numbers<[1], [0], [0], [1], [0, 0, 1, 1], [], []>} : vector<8x128xbf16>, vector<128x8xbf16>, vector<8x8xf32> -> vector<8x8xf32>
    %c0_9 = arith.constant 0 : index
    %c0_10 = arith.constant 0 : index
    %12 = vector.load %arg5[%c0_9, %c0_10] : memref<1x8xf32, #tpu.memory_space<vmem>>, vector<1x8xf32>
    %13 = vector.broadcast %12 : vector<1x8xf32> to vector<8x8xf32>
    %14 = arith.addf %11, %13 : vector<8x8xf32>
    %15 = math.tanh %14 : vector<8x8xf32>
    %cst_11 = arith.constant 1.000000e+02 : f32
    %16 = vector.broadcast %cst_11 : f32 to vector<8x8xf32>
    %17 = arith.mulf %15, %16 : vector<8x8xf32>
    %c0_12 = arith.constant 0 : index
    %c0_13 = arith.constant 0 : index
    %18 = vector.load %arg6[%c0_12, %c0_13] : memref<8x8xf32, #tpu.memory_space<vmem>>, vector<8x8xf32>
    tpu.vector_store %arg6[%c0_12, %c0_13], %17 {strides = array<i32>} : memref<8x8xf32, #tpu.memory_space<vmem>>, vector<8x8xf32>,
    return
  }
  func.func @transform_0(%arg0: i32) -> (i32, i32) {
    %c0_i32 = arith.constant 0 : i32
    %c0_i32_0 = arith.constant 0 : i32
    return %arg0, %c0_i32 : i32, i32
  }
  func.func @transform_1(%arg0: i32) -> (i32, i32) {
    %c0_i32 = arith.constant 0 : i32
    %c0_i32_0 = arith.constant 0 : i32
    %c0_i32_1 = arith.constant 0 : i32
    return %c0_i32, %c0_i32_0 : i32, i32
  }
  func.func @transform_2(%arg0: i32) -> (i32, i32) {
    %c0_i32 = arith.constant 0 : i32
    %c0_i32_0 = arith.constant 0 : i32
    %c0_i32_1 = arith.constant 0 : i32
    return %c0_i32, %c0_i32_0 : i32, i32
  }
  func.func @transform_3(%arg0: i32) -> (i32, i32) {
    %c0_i32 = arith.constant 0 : i32
    %c0_i32_0 = arith.constant 0 : i32
    %c0_i32_1 = arith.constant 0 : i32
    return %c0_i32, %c0_i32_0 : i32, i32
  }
  func.func @transform_4(%arg0: i32) -> (i32, i32) {
    %c0_i32 = arith.constant 0 : i32
    %c0_i32_0 = arith.constant 0 : i32
    %c0_i32_1 = arith.constant 0 : i32
    return %c0_i32, %c0_i32_0 : i32, i32
  }
  func.func @transform_5(%arg0: i32) -> (i32, i32) {
    %c0_i32 = arith.constant 0 : i32
    %c0_i32_0 = arith.constant 0 : i32
    return %arg0, %c0_i32 : i32, i32
  }
}

</mosaic_0001>

<llo_original>
// kernel: _pallas_forward.1
$region0: #{_pallas_forward.1}
  #allocation0 [shape = 'u32[]', space=smem, size = 0x4, offset = 0x4, fixed_abs, tag = 'smem constant byte address 0x4 - core index']
  #allocation1 [shape = 'u32[144,128]{1,0:T(1,128)}', space=vmem, size = 0x12000, scoped, tag = 'internal scratch']
  %s0 = inlined_call_operand.vmem [shape: f32[8,32], index: 0, kind: input, shape index: {}]
  %s1 = inlined_call_operand.vmem [shape: bf16[32,128], index: 1, kind: input, shape index: {}]
  %s2 = inlined_call_operand.vmem [shape: f32[1,128], index: 2, kind: input, shape index: {}]
  %s3 = inlined_call_operand.vmem [shape: bf16[128,8], index: 3, kind: input, shape index: {}]
  %s4 = inlined_call_operand.vmem [shape: f32[1,8], index: 4, kind: input, shape index: {}]
  %s5 = inlined_call_operand.hbm [shape: f32[8,8], index: 5, kind: output, shape index: {}]
  %s6 = sld [smem:[#allocation0]]
  $region30: #{_pallas_forward.1} parent=0
    _
  %s8 = ssub.s32 1, %s6
  %s9 = scalar_select 0, %s8, %s6
  $region1: #{_pallas_forward.1} parent=0
    #allocation2 [shape = 'u8[4096]{0}', space=vmem, size = 0x1000, scoped, tag = 'output window, operand 0, single buffered']
    #allocation3 [shape = 's32[1]{0}', space=sflag, size = 0x4, scoped, tag = 'scoped memory for _pallas_forward.1']
    %10 = vsyncpa [#allocation3], 0
    // Predicated region
    $region2: #{_pallas_forward.1} parent=1 // pred_check
      _
    $region3: #{_pallas_forward.1} parent=1 // pred_check_branch
      %12 = sbr.rel (0) target = $region5
    $region4: #{_pallas_forward.1} parent=1 // pred_region
      _
    $region5: #{_pallas_forward.1} parent=1 // pred_fallthru
      _
    // Predicated region
    $region6: #{_pallas_forward.1} parent=1 // pred_check
      _
    $region7: #{_pallas_forward.1} parent=1 // pred_check_branch
      %14 = sbr.rel (0) target = $region9
    $region8: #{_pallas_forward.1} parent=1 // pred_region
      _
    $region9: #{_pallas_forward.1} parent=1 // pred_fallthru
      _
    // Predicated region
    $region10: #{_pallas_forward.1} parent=1 // pred_check
      _
    $region11: #{_pallas_forward.1} parent=1 // pred_check_branch
      %16 = sbr.rel (0) target = $region13
    $region12: #{_pallas_forward.1} parent=1 // pred_region
      _
    $region13: #{_pallas_forward.1} parent=1 // pred_fallthru
      _
    // Predicated region
    $region14: #{_pallas_forward.1} parent=1 // pred_check
      _
    $region15: #{_pallas_forward.1} parent=1 // pred_check_branch
      %18 = sbr.rel (0) target = $region17
    $region16: #{_pallas_forward.1} parent=1 // pred_region
      _
    $region17: #{_pallas_forward.1} parent=1 // pred_fallthru
      _
    // Predicated region
    $region18: #{_pallas_forward.1} parent=1 // pred_check
      _
    $region19: #{_pallas_forward.1} parent=1 // pred_check_branch
      %20 = sbr.rel (0) target = $region21
    $region20: #{_pallas_forward.1} parent=1 // pred_region
      _
    $region21: #{_pallas_forward.1} parent=1 // pred_fallthru
      _
    %v22 = vld [vmem:[%s0] sm:$0xff]
    %v23 = vpack.c.bf16 %v22, %v22
    %v24 = vld [vmem:[%s1] sm:$0xf]
    %v25 = vld [vmem:[%s1 + $0x4] sm:$0xf]
    %v26 = vld [vmem:[%s1 + $0x8] sm:$0xf]
    %v27 = vld [vmem:[%s1 + $0xc] sm:$0xf]
    %v28 = vld [vmem:[%s2] sm:$0x1]
    %v30 = vlaneseq
    %v31 = vshrl.u32 %v30, 7
    %v32 = vsub.s32 0, %v31
    %v33 = vrot.slane %v28, %v32
    %v39 = vunpack.c.l.b16 %v24
    %v40 = vunpack.c.l.b16 %v25
    %v41 = vunpack.c.l.b16 %v26
    %v42 = vunpack.c.l.b16 %v27
    %v43 = vpack.c.b16 %v40, %v39
    %v44 = vpack.c.b16 %v42, %v41
    %vm47 = vcmask 261120
    %v49 = vsel %vm47, %v23, 0
    %51 = vmatprep.subr.bf16.mxu0 0
    %52 = vmatpush1.bf16.msra.mxu0 0
    %53 = vmatprep.subr.bf16.mxu0 0
    %54 = vmatpush1.bf16.msra.mxu0 0
    %55 = vmatprep.subr.bf16.mxu0 0
    %56 = vmatpush1.bf16.msra.mxu0 0
    %57 = vmatprep.subr.bf16.mxu0 0
    %58 = vmatpush1.bf16.msra.mxu0 0
    %59 = vmatprep.subr.bf16.mxu0 0
    %60 = vmatpush1.bf16.msra.mxu0 0
    %61 = vmatprep.subr.bf16.mxu0 0
    %62 = vmatpush1.bf16.msra.mxu0 0
    %63 = vmatprep.subr.bf16.mxu0 0
    %64 = vmatpush1.bf16.msra.mxu0 %v44
    %65 = vmatprep.subr.bf16.mxu0 0
    %66 = vmatpush1.bf16.msra.mxu0 %v43
    %67 = vmatprep.subr.bf16.mxu0 0
    %68 = vmatpush2.bf16.msra.mxu0 0
    %69 = vmatprep.subr.bf16.mxu0 0
    %70 = vmatpush2.bf16.msra.mxu0 0
    %71 = vmatprep.subr.bf16.mxu0 0
    %72 = vmatpush2.bf16.msra.mxu0 0
    %73 = vmatprep.subr.bf16.mxu0 0
    %74 = vmatpush2.bf16.msra.mxu0 0
    %75 = vmatprep.subr.bf16.mxu0 0
    %76 = vmatpush2.bf16.msra.mxu0 0
    %77 = vmatprep.subr.bf16.mxu0 0
    %78 = vmatpush2.bf16.msra.mxu0 0
    %79 = vmatprep.subr.bf16.mxu0 0
    %80 = vmatpush2.bf16.msra.mxu0 0
    %81 = vmatprep.subr.bf16.mxu0 0
    %82 = vmatpush2.bf16.msra.mxu0 0
    %83 = vmatprep.mubr.bf16.mxu0 0
    %84 = vmatmul.mubr.bf16.gmra.mxu0 %v49
    %v85 = vpop.f32.mrf.mxu0
    %v86 = vadd.f32 %v33, %v85
    %v87 = vpop.f32.mrf.mxu0
    %v88 = vpop.f32.mrf.mxu0
    %v89 = vpop.f32.mrf.mxu0
    %90 = vdwg.mxu0
    %v91 = vmax.f32 %v86, 0.0
    %v92 = vpack.c.bf16 %v91, %v91
    %v93 = vld [vmem:[%s3] sm:$0xf]
    %v94 = vld [vmem:[%s3 + $0x4] sm:$0xf]
    %v95 = vld [vmem:[%s3 + $0x8] sm:$0xf]
    %v96 = vld [vmem:[%s3 + $0xc] sm:$0xf]
    %v97 = vld [vmem:[%s3 + $0x10] sm:$0xf]
    %v98 = vld [vmem:[%s3 + $0x14] sm:$0xf]
    %v99 = vld [vmem:[%s3 + $0x18] sm:$0xf]
    %v100 = vld [vmem:[%s3 + $0x1c] sm:$0xf]
    %v101 = vld [vmem:[%s3 + $0x20] sm:$0xf]
    %v102 = vld [vmem:[%s3 + $0x24] sm:$0xf]
    %v103 = vld [vmem:[%s3 + $0x28] sm:$0xf]
    %v104 = vld [vmem:[%s3 + $0x2c] sm:$0xf]
    %v105 = vld [vmem:[%s3 + $0x30] sm:$0xf]
    %v106 = vld [vmem:[%s3 + $0x34] sm:$0xf]
    %v107 = vld [vmem:[%s3 + $0x38] sm:$0xf]
    %v108 = vld [vmem:[%s3 + $0x3c] sm:$0xf]
    %v109 = vld [vmem:[%s4] sm:$0x1]
    %v111 = vlaneseq
    %v112 = vshrl.u32 %v111, 7
    %v113 = vsub.s32 0, %v112
    %v114 = vrot.slane %v109, %v113
    %v132 = vunpack.c.l.b16 %v93
    %v133 = vunpack.c.l.b16 %v94
    %v134 = vunpack.c.l.b16 %v95
    %v135 = vunpack.c.l.b16 %v96
    %v136 = vunpack.c.l.b16 %v97
    %v137 = vunpack.c.l.b16 %v98
    %v138 = vunpack.c.l.b16 %v99
    %v139 = vunpack.c.l.b16 %v100
    %v140 = vunpack.c.l.b16 %v101
    %v141 = vunpack.c.l.b16 %v102
    %v142 = vunpack.c.l.b16 %v103
    %v143 = vunpack.c.l.b16 %v104
    %v144 = vunpack.c.l.b16 %v105
    %v145 = vunpack.c.l.b16 %v106
    %v146 = vunpack.c.l.b16 %v107
    %v147 = vunpack.c.l.b16 %v108
    %v148 = vpack.c.b16 %v133, %v132
    %v149 = vpack.c.b16 %v135, %v134
    %v150 = vpack.c.b16 %v137, %v136
    %v151 = vpack.c.b16 %v139, %v138
    %v152 = vpack.c.b16 %v141, %v140
    %v153 = vpack.c.b16 %v143, %v142
    %v154 = vpack.c.b16 %v145, %v144
    %v155 = vpack.c.b16 %v147, %v146
    %164 = vmatprep.subr.bf16.mxu0 0
    %165 = vmatpush1.bf16.msra.mxu0 %v155
    %166 = vmatprep.subr.bf16.mxu0 0
    %167 = vmatpush1.bf16.msra.mxu0 %v154
    %168 = vmatprep.subr.bf16.mxu0 0
    %169 = vmatpush1.bf16.msra.mxu0 %v153
    %170 = vmatprep.subr.bf16.mxu0 0
    %171 = vmatpush1.bf16.msra.mxu0 %v152
    %172 = vmatprep.subr.bf16.mxu0 0
    %173 = vmatpush1.bf16.msra.mxu0 %v151
    %174 = vmatprep.subr.bf16.mxu0 0
    %175 = vmatpush1.bf16.msra.mxu0 %v150
    %176 = vmatprep.subr.bf16.mxu0 0
    %177 = vmatpush1.bf16.msra.mxu0 %v149
    %178 = vmatprep.subr.bf16.mxu0 0
    %179 = vmatpush1.bf16.msra.mxu0 %v148
    %180 = vmatprep.subr.bf16.mxu0 0
    %181 = vmatpush2.bf16.msra.mxu0 0
    %182 = vmatprep.subr.bf16.mxu0 0
    %183 = vmatpush2.bf16.msra.mxu0 0
    %184 = vmatprep.subr.bf16.mxu0 0
    %185 = vmatpush2.bf16.msra.mxu0 0
    %186 = vmatprep.subr.bf16.mxu0 0
    %187 = vmatpush2.bf16.msra.mxu0 0
    %188 = vmatprep.subr.bf16.mxu0 0
    %189 = vmatpush2.bf16.msra.mxu0 0
    %190 = vmatprep.subr.bf16.mxu0 0
    %191 = vmatpush2.bf16.msra.mxu0 0
    %192 = vmatprep.subr.bf16.mxu0 0
    %193 = vmatpush2.bf16.msra.mxu0 0
    %194 = vmatprep.subr.bf16.mxu0 0
    %195 = vmatpush2.bf16.msra.mxu0 0
    %196 = vmatprep.mubr.bf16.mxu0 0
    %197 = vmatmul.mubr.bf16.gmra.mxu0 %v92
    %v198 = vpop.f32.mrf.mxu0
    %v199 = vadd.f32 %v114, %v198
    %v200 = vpop.f32.mrf.mxu0
    %v201 = vpop.f32.mrf.mxu0
    %v202 = vpop.f32.mrf.mxu0
    %203 = vdwg.mxu0
    %v204 = vtanh.pop %v199
    %v205 = vmul.f32 %v204, 100.0
    %vm206 = vcmask 64512
    %207 = vst.msk [vmem:[#allocation2] sm:$0xff] %vm206, %v205
    // Predicated region
    $region22: #{_pallas_forward.1} parent=1 // pred_check
      _
    $region23: #{_pallas_forward.1} parent=1 // pred_check_branch
      %209 = sbr.rel (0) target = $region25
    $region24: #{_pallas_forward.1} parent=1 // pred_region
      %s211 = ssub.s32 128, 128
      %212 = vsyncadd [#allocation3], %s211
      %s214 = sshll.u32 [#allocation2], 4
      %s215 = int_to_ptr.vmem [resolvable:$true] %s214
      %217 = dma.vmem_to_hbm [thread:$0]  %s215, 128, %s5, [#allocation3]
    $region25: #{_pallas_forward.1} parent=1 // pred_fallthru
      _
    // Predicated region
    $region26: #{_pallas_forward.1} parent=1 // pred_check
      _
    $region27: #{_pallas_forward.1} parent=1 // pred_check_branch
      %219 = sbr.rel (0) target = $region29
    $region28: #{_pallas_forward.1} parent=1 // pred_region
      %220 = dma.done [#allocation3], 128
    $region29: #{_pallas_forward.1} parent=1 // pred_fallthru
      _
    %221 = vsyncpa [#allocation3], 1

</llo_original>
